<compile_context>
chip_gen: v7x
topology: tpu7x:2x2x1
jax: 0.10.0
libtpu: 0.0.40
codegen_flags: <defaults>
</compile_context>

<pallas_src>
import jax
import jax.numpy as jnp
from jax.experimental import pallas as pl

_BN_EPS = 1e-5
_LANE = 128
_SUBLANE = 8


def _round_up(v, m):
    return -(-v // m) * m


# ---------------------------------------------------------------------------
# Static slab layout: row offsets of every parameter segment.
# ---------------------------------------------------------------------------
def _build_layout(layers):
    # Single lane-dense width for all padded feature dims.
    W = max(_round_up(n, _LANE) for n in layers[1:])
    hidden_meta = []
    off = 0
    k = layers[0]                       # first hidden layer consumes raw x
    for _ in layers[1:-1]:
        rows_w = _round_up(k, _SUBLANE)
        hidden_meta.append(dict(w_off=off, k=k, gb_off=off + rows_w))
        off += rows_w + _SUBLANE        # weight rows + 8-row gamma/beta block
        k = W                           # later layers consume lane-padded acts
    rows_w = _round_up(k, _SUBLANE)
    final_meta = dict(w_off=off, k=k, b_off=off + rows_w)
    off += rows_w + _SUBLANE
    return hidden_meta, final_meta, off, W


# ---------------------------------------------------------------------------
# Fused kernel factory (layer loop unrolled at trace time)
# ---------------------------------------------------------------------------
def _make_mlp_kernel(hidden_meta, final_meta, W, matmul_dtype):
    def kernel(x_ref, p_ref, o_ref):
        y = x_ref[...]
        inv_b = 1.0 / y.shape[0]

        for m in hidden_meta:
            # Linear (MXU), f32 accumulation.  No hidden bias: it is exactly
            # cancelled by the training-mode BN mean subtraction.
            w = p_ref[m["w_off"]:m["w_off"] + m["k"], :]
            y = jnp.dot(y.astype(matmul_dtype), w,
                        preferred_element_type=jnp.float32)

            # BatchNorm1d (training mode, biased variance): one fused axis-0
            # reduction over the lane-concatenated [y | y*y] block.
            cat = jnp.concatenate([y, y * y], axis=1)          # (B, 2W)
            s = jnp.sum(cat, axis=0, keepdims=True)            # (1, 2W)
            mean = s[:, :W] * inv_b
            var = s[:, W:] * inv_b - mean * mean

            gb = p_ref[m["gb_off"]:m["gb_off"] + _SUBLANE, :]  # aligned 8-row load
            gamma = gb[0:1, :].astype(jnp.float32)
            beta = gb[1:2, :].astype(jnp.float32)
            scale = gamma * jax.lax.rsqrt(var + _BN_EPS)
            shift = beta - mean * scale
            y = jnp.maximum(y * scale + shift, 0.0)            # BN + ReLU (one FMA)

        wf = p_ref[final_meta["w_off"]:final_meta["w_off"] + final_meta["k"], :]
        bfb = p_ref[final_meta["b_off"]:final_meta["b_off"] + _SUBLANE, :]
        bf = bfb[0:1, :].astype(jnp.float32)
        out = jnp.dot(y.astype(matmul_dtype), wf,
                      preferred_element_type=jnp.float32) + bf
        o_ref[...] = out.astype(o_ref.dtype)                   # lane-dense, unmasked

    return kernel


# ---------------------------------------------------------------------------
# Wrapper: single gridless pallas_call, full-array blocks (fits VMEM easily)
# ---------------------------------------------------------------------------
def _full_spec(shape):
    return pl.BlockSpec(shape, lambda: (0,) * len(shape))


def make_mlp_forward(layers, matmul_dtype=jnp.float32):
    hidden_meta, final_meta, n_rows, W = _build_layout(layers)
    n_out = layers[-1]
    kernel = _make_mlp_kernel(hidden_meta, final_meta, W, matmul_dtype)
    p_bytes = n_rows * W * jnp.dtype(matmul_dtype).itemsize

    def _cost(B):
        flops, trans = 0, 0
        k = layers[0]
        for _ in layers[1:-1]:
            flops += 2 * B * k * W + 10 * B * W     # matmul + BN/ReLU
            trans += W                              # rsqrt per feature
            k = W
        flops += 2 * B * k * W                      # final matmul
        bytes_acc = 4 * B * layers[0] + p_bytes + 4 * B * W
        return pl.CostEstimate(flops=flops, transcendentals=trans,
                               bytes_accessed=bytes_acc)

    @jax.jit
    def forward(x, param_slab):
        B = x.shape[0]
        out_pad = pl.pallas_call(
            kernel,
            out_shape=jax.ShapeDtypeStruct((B, W), jnp.float32),
            in_specs=[_full_spec(x.shape), _full_spec(param_slab.shape)],
            out_specs=_full_spec((B, W)),
            cost_estimate=_cost(B),
        )(x, param_slab)
        # Consumers that accept padded lanes can take out_pad directly; slice
        # here to match the nn.Module output contract (cheap XLA slice).
        return out_pad[:, :n_out]

    return forward


# ---------------------------------------------------------------------------
# Parameter construction: PyTorch-style params (for the reference) + packed slab
# ---------------------------------------------------------------------------
def init_mlp_params(key, layers):
    hidden_meta, final_meta, n_rows, W = _build_layout(layers)
    slab = jnp.zeros((n_rows, W), jnp.float32)
    torch_hidden = []

    for m, (n_in, n_out) in zip(hidden_meta, zip(layers[:-2], layers[1:-1])):
        key, kw, kb = jax.random.split(key, 3)
        bound = 1.0 / float(n_in) ** 0.5
        w = jax.random.uniform(kw, (n_out, n_in), jnp.float32, -bound, bound)
        b = jax.random.uniform(kb, (n_out,), jnp.float32, -bound, bound)
        gamma = jnp.ones((n_out,), jnp.float32)
        beta = jnp.zeros((n_out,), jnp.float32)
        torch_hidden.append((w, b, gamma, beta))
        # Pack (hidden bias intentionally omitted: cancelled by BN).
        slab = slab.at[m["w_off"]:m["w_off"] + n_in, :n_out].set(w.T)
        slab = slab.at[m["gb_off"], :n_out].set(gamma)
        slab = slab.at[m["gb_off"] + 1, :n_out].set(beta)

    n_in, n_out = layers[-2], layers[-1]
    key, kw, kb = jax.random.split(key, 3)
    bound = 1.0 / float(n_in) ** 0.5
    w = jax.random.uniform(kw, (n_out, n_in), jnp.float32, -bound, bound)
    b = jax.random.uniform(kb, (n_out,), jnp.float32, -bound, bound)
    torch_final = (w, b)
    slab = slab.at[final_meta["w_off"]:final_meta["w_off"] + n_in, :n_out].set(w.T)
    slab = slab.at[final_meta["b_off"], :n_out].set(b)
    return torch_hidden, torch_final, slab


# ---------------------------------------------------------------------------
# Pure-JAX reference (matches PyTorch forward, training mode, drop_rate=None)
# ---------------------------------------------------------------------------
def mlp_reference(x, torch_hidden, torch_final):
    y = x
    for w, b, gamma, beta in torch_hidden:
        y = y @ w.T + b
        mean = jnp.mean(y, axis=0, keepdims=True)
        var = jnp.mean((y - mean) ** 2, axis=0, keepdims=True)
        y = (y - mean) * jax.lax.rsqrt(var + _BN_EPS) * gamma + beta
        y = jnp.maximum(y, 0.0)
    w, b = torch_final
    return y @ w.T + b


# ---------------------------------------------------------------------------
if __name__ == "__main__":
    layers = [16, 32, 32, 8]    # in_features, hidden, hidden, out_features
    B = 128                     # points; BatchNorm1d normalizes over this axis

    key = jax.random.PRNGKey(0)
    key, kx = jax.random.split(key)
    x = jax.random.normal(kx, (B, layers[0]), jnp.float32)

    torch_hidden, torch_final, slab_f32 = init_mlp_params(key, layers)
    ref = mlp_reference(x, torch_hidden, torch_final)

    # f32 path (exact PyTorch forward semantics).
    fwd_f32 = make_mlp_forward(layers, matmul_dtype=jnp.float32)
    out = jax.block_until_ready(fwd_f32(x, slab_f32))
    assert out.shape == (B, layers[-1]), out.shape
    assert jnp.isfinite(out).all()
    assert jnp.allclose(out, ref, atol=1e-3, rtol=1e-3), float(
        jnp.max(jnp.abs(out - ref)))

    # bf16 MXU path: bf16 parameter slab (half the weight DMA bytes, fewer MXU
    # passes), f32 accumulation and f32 BN/ReLU math.  Looser tolerance.
    fwd_bf16 = make_mlp_forward(layers, matmul_dtype=jnp.bfloat16)
    out_bf16 = jax.block_until_ready(fwd_bf16(x, slab_f32.astype(jnp.bfloat16)))
    assert jnp.isfinite(out_bf16).all()
    assert jnp.allclose(out_bf16, ref, atol=5e-2, rtol=5e-2), float(
        jnp.max(jnp.abs(out_bf16 - ref)))

    print("KERNEL_OK")
</pallas_src>

<mosaic_0001>
module attributes {stable_mosaic.version = 11 : i64} {
  func.func @kernel(%arg0: memref<128x16xf32, #tpu.memory_space<vmem>>, %arg1: memref<296x128xf32, #tpu.memory_space<vmem>>, %arg2: memref<128x128xf32, #tpu.memory_space<vmem>>) attributes {dimension_semantics = [], scalar_prefetch = 0 : i64, scratch_operands = 0 : i64, tpu.core_type = #tpu.core_type<tc>} {
    %c0 = arith.constant 0 : index
    %c0_0 = arith.constant 0 : index
    %0 = vector.load %arg0[%c0, %c0_0] : memref<128x16xf32, #tpu.memory_space<vmem>>, vector<128x16xf32>
    %c0_1 = arith.constant 0 : index
    %c0_2 = arith.constant 0 : index
    %1 = vector.load %arg1[%c0_1, %c0_2] : memref<296x128xf32, #tpu.memory_space<vmem>>, vector<16x128xf32>
    %cst = arith.constant dense<0.000000e+00> : vector<128x128xf32>
    %2 = tpu.matmul %0, %1, %cst {dimension_numbers = #tpu.dot_dimension_numbers<[1], [0], [0], [1], [0, 0, 1, 1], [], []>} : vector<128x16xf32>, vector<16x128xf32>, vector<128x128xf32> -> vector<128x128xf32>
    %3 = arith.mulf %2, %2 : vector<128x128xf32>
    %4 = tpu.concatenate %2, %3 in 1 : vector<128x128xf32>, vector<128x128xf32> -> vector<128x256xf32>
    %cst_3 = arith.constant dense<0.000000e+00> : vector<256xf32>
    %5 = vector.multi_reduction <add>, %4, %cst_3 [0] : vector<128x256xf32> to vector<256xf32>
    %6 = vector.shape_cast %5 : vector<256xf32> to vector<1x256xf32>
    %7 = vector.extract_strided_slice %6 {offsets = [0, 0], sizes = [1, 128], strides = [1, 1]} : vector<1x256xf32> to vector<1x128xf32>
    %cst_4 = arith.constant 7.812500e-03 : f32
    %8 = vector.broadcast %cst_4 : f32 to vector<1x128xf32>
    %9 = arith.mulf %7, %8 : vector<1x128xf32>
    %10 = vector.extract_strided_slice %6 {offsets = [0, 128], sizes = [1, 128], strides = [1, 1]} : vector<1x256xf32> to vector<1x128xf32>
    %cst_5 = arith.constant 7.812500e-03 : f32
    %11 = vector.broadcast %cst_5 : f32 to vector<1x128xf32>
    %12 = arith.mulf %10, %11 : vector<1x128xf32>
    %13 = arith.mulf %9, %9 : vector<1x128xf32>
    %14 = arith.subf %12, %13 : vector<1x128xf32>
    %c16 = arith.constant 16 : index
    %c0_6 = arith.constant 0 : index
    %15 = vector.load %arg1[%c16, %c0_6] : memref<296x128xf32, #tpu.memory_space<vmem>>, vector<8x128xf32>
    %16 = vector.extract_strided_slice %15 {offsets = [0, 0], sizes = [1, 128], strides = [1, 1]} : vector<8x128xf32> to vector<1x128xf32>
    %17 = vector.extract_strided_slice %15 {offsets = [1, 0], sizes = [1, 128], strides = [1, 1]} : vector<8x128xf32> to vector<1x128xf32>
    %cst_7 = arith.constant 9.99999974E-6 : f32
    %18 = vector.broadcast %cst_7 : f32 to vector<1x128xf32>
    %19 = arith.addf %14, %18 : vector<1x128xf32>
    %20 = math.rsqrt %19 : vector<1x128xf32>
    %21 = arith.mulf %16, %20 : vector<1x128xf32>
    %22 = arith.mulf %9, %21 : vector<1x128xf32>
    %23 = arith.subf %17, %22 : vector<1x128xf32>
    %24 = vector.broadcast %21 : vector<1x128xf32> to vector<128x128xf32>
    %25 = arith.mulf %2, %24 : vector<128x128xf32>
    %26 = vector.broadcast %23 : vector<1x128xf32> to vector<128x128xf32>
    %27 = arith.addf %25, %26 : vector<128x128xf32>
    %cst_8 = arith.constant 0.000000e+00 : f32
    %28 = vector.broadcast %cst_8 : f32 to vector<128x128xf32>
    %29 = arith.maximumf %27, %28 : vector<128x128xf32>
    %c24 = arith.constant 24 : index
    %c0_9 = arith.constant 0 : index
    %30 = vector.load %arg1[%c24, %c0_9] : memref<296x128xf32, #tpu.memory_space<vmem>>, vector<128x128xf32>
    %cst_10 = arith.constant dense<0.000000e+00> : vector<128x128xf32>
    %31 = tpu.matmul %29, %30, %cst_10 {dimension_numbers = #tpu.dot_dimension_numbers<[1], [0], [0], [1], [0, 0, 1, 1], [], []>} : vector<128x128xf32>, vector<128x128xf32>, vector<128x128xf32> -> vector<128x128xf32>
    %32 = arith.mulf %31, %31 : vector<128x128xf32>
    %33 = tpu.concatenate %31, %32 in 1 : vector<128x128xf32>, vector<128x128xf32> -> vector<128x256xf32>
    %cst_11 = arith.constant dense<0.000000e+00> : vector<256xf32>
    %34 = vector.multi_reduction <add>, %33, %cst_11 [0] : vector<128x256xf32> to vector<256xf32>
    %35 = vector.shape_cast %34 : vector<256xf32> to vector<1x256xf32>
    %36 = vector.extract_strided_slice %35 {offsets = [0, 0], sizes = [1, 128], strides = [1, 1]} : vector<1x256xf32> to vector<1x128xf32>
    %cst_12 = arith.constant 7.812500e-03 : f32
    %37 = vector.broadcast %cst_12 : f32 to vector<1x128xf32>
    %38 = arith.mulf %36, %37 : vector<1x128xf32>
    %39 = vector.extract_strided_slice %35 {offsets = [0, 128], sizes = [1, 128], strides = [1, 1]} : vector<1x256xf32> to vector<1x128xf32>
    %cst_13 = arith.constant 7.812500e-03 : f32
    %40 = vector.broadcast %cst_13 : f32 to vector<1x128xf32>
    %41 = arith.mulf %39, %40 : vector<1x128xf32>
    %42 = arith.mulf %38, %38 : vector<1x128xf32>
    %43 = arith.subf %41, %42 : vector<1x128xf32>
    %c152 = arith.constant 152 : index
    %c0_14 = arith.constant 0 : index
    %44 = vector.load %arg1[%c152, %c0_14] : memref<296x128xf32, #tpu.memory_space<vmem>>, vector<8x128xf32>
    %45 = vector.extract_strided_slice %44 {offsets = [0, 0], sizes = [1, 128], strides = [1, 1]} : vector<8x128xf32> to vector<1x128xf32>
    %46 = vector.extract_strided_slice %44 {offsets = [1, 0], sizes = [1, 128], strides = [1, 1]} : vector<8x128xf32> to vector<1x128xf32>
    %cst_15 = arith.constant 9.99999974E-6 : f32
    %47 = vector.broadcast %cst_15 : f32 to vector<1x128xf32>
    %48 = arith.addf %43, %47 : vector<1x128xf32>
    %49 = math.rsqrt %48 : vector<1x128xf32>
    %50 = arith.mulf %45, %49 : vector<1x128xf32>
    %51 = arith.mulf %38, %50 : vector<1x128xf32>
    %52 = arith.subf %46, %51 : vector<1x128xf32>
    %53 = vector.broadcast %50 : vector<1x128xf32> to vector<128x128xf32>
    %54 = arith.mulf %31, %53 : vector<128x128xf32>
    %55 = vector.broadcast %52 : vector<1x128xf32> to vector<128x128xf32>
    %56 = arith.addf %54, %55 : vector<128x128xf32>
    %cst_16 = arith.constant 0.000000e+00 : f32
    %57 = vector.broadcast %cst_16 : f32 to vector<128x128xf32>
    %58 = arith.maximumf %56, %57 : vector<128x128xf32>
    %c160 = arith.constant 160 : index
    %c0_17 = arith.constant 0 : index
    %59 = vector.load %arg1[%c160, %c0_17] : memref<296x128xf32, #tpu.memory_space<vmem>>, vector<128x128xf32>
    %c288 = arith.constant 288 : index
    %c0_18 = arith.constant 0 : index
    %60 = vector.load %arg1[%c288, %c0_18] : memref<296x128xf32, #tpu.memory_space<vmem>>, vector<8x128xf32>
    %61 = vector.extract_strided_slice %60 {offsets = [0, 0], sizes = [1, 128], strides = [1, 1]} : vector<8x128xf32> to vector<1x128xf32>
    %cst_19 = arith.constant dense<0.000000e+00> : vector<128x128xf32>
    %62 = tpu.matmul %58, %59, %cst_19 {dimension_numbers = #tpu.dot_dimension_numbers<[1], [0], [0], [1], [0, 0, 1, 1], [], []>} : vector<128x128xf32>, vector<128x128xf32>, vector<128x128xf32> -> vector<128x128xf32>
    %63 = vector.broadcast %61 : vector<1x128xf32> to vector<128x128xf32>
    %64 = arith.addf %62, %63 : vector<128x128xf32>
    %c0_20 = arith.constant 0 : index
    %c0_21 = arith.constant 0 : index
    %65 = vector.load %arg2[%c0_20, %c0_21] : memref<128x128xf32, #tpu.memory_space<vmem>>, vector<128x128xf32>
    tpu.vector_store %arg2[%c0_20, %c0_21], %64 {strides = array<i32>} : memref<128x128xf32, #tpu.memory_space<vmem>>, vector<128x128xf32>,
    return
  }
}

</mosaic_0001>

<llo_original>
// kernel: forward.1
$region0: #{forward.1}
  #allocation0 [shape = 'u32[]', space=smem, size = 0x4, offset = 0x4, fixed_abs, tag = 'smem constant byte address 0x4 - core index']
  #allocation1 [shape = 'u32[144,128]{1,0:T(1,128)}', space=vmem, size = 0x12000, scoped, tag = 'internal scratch']
  %s0 = inlined_call_operand.vmem [shape: f32[128,16], index: 0, kind: input, shape index: {}]
  %s1 = inlined_call_operand.hbm [shape: f32[296,128], index: 1, kind: input, shape index: {}]
  %s2 = inlined_call_operand.vmem [shape: f32[128,128], index: 2, kind: output, shape index: {}]
  %s3 = sld [smem:[#allocation0]]
  $region22: #{forward.1} parent=0
    _
  %s5 = ssub.s32 1, %s3
  %s6 = scalar_select 0, %s5, %s3
  $region1: #{forward.1} parent=0
    #allocation2 [shape = 'u8[151552]{0}', space=vmem, size = 0x25000, scoped, tag = 'input window, operand 1, single buffered']
    #allocation3 [shape = 's32[1]{0}', space=sflag, size = 0x4, scoped, tag = 'scoped memory for forward.1']
    %7 = vsyncpa [#allocation3], 0
    // Predicated region
    $region2: #{forward.1} parent=1 // pred_check
      _
    $region3: #{forward.1} parent=1 // pred_check_branch
      %9 = sbr.rel (0) target = $region5
    $region4: #{forward.1} parent=1 // pred_region
      _
    $region5: #{forward.1} parent=1 // pred_fallthru
      _
    // Predicated region
    $region6: #{forward.1} parent=1 // pred_check
      _
    $region7: #{forward.1} parent=1 // pred_check_branch
      %11 = sbr.rel (0) target = $region9
    $region8: #{forward.1} parent=1 // pred_region
      %s13 = ssub.s32 4736, 4736
      %14 = vsyncadd [#allocation3], %s13
      %s15 = sshll.u32 [#allocation2], 4
      %s16 = int_to_ptr.vmem [resolvable:$true] %s15
      %21 = dma.hbm_to_vmem [thread:$0]  %s1, 4736, %s16, [#allocation3], 128, 128, 8
    $region9: #{forward.1} parent=1 // pred_fallthru
      _
    // Predicated region
    $region10: #{forward.1} parent=1 // pred_check
      _
    $region11: #{forward.1} parent=1 // pred_check_branch
      %23 = sbr.rel (0) target = $region13
    $region12: #{forward.1} parent=1 // pred_region
      %24 = dma.done [#allocation3], 4736
    $region13: #{forward.1} parent=1 // pred_fallthru
      _
    %v25 = vld [vmem:[%s0] sm:$0xff]
    %v26 = vld [vmem:[%s0 + $0x8] sm:$0xff]
    %v27 = vld [vmem:[%s0 + $0x10] sm:$0xff]
    %v28 = vld [vmem:[%s0 + $0x18] sm:$0xff]
    %v29 = vld [vmem:[%s0 + $0x20] sm:$0xff]
    %v30 = vld [vmem:[%s0 + $0x28] sm:$0xff]
    %v31 = vld [vmem:[%s0 + $0x30] sm:$0xff]
    %v32 = vld [vmem:[%s0 + $0x38] sm:$0xff]
    %v33 = vld [vmem:[%s0 + $0x40] sm:$0xff]
    %v34 = vld [vmem:[%s0 + $0x48] sm:$0xff]
    %v35 = vld [vmem:[%s0 + $0x50] sm:$0xff]
    %v36 = vld [vmem:[%s0 + $0x58] sm:$0xff]
    %v37 = vld [vmem:[%s0 + $0x60] sm:$0xff]
    %v38 = vld [vmem:[%s0 + $0x68] sm:$0xff]
    %v39 = vld [vmem:[%s0 + $0x70] sm:$0xff]
    %v40 = vld [vmem:[%s0 + $0x78] sm:$0xff]
    %v41 = vld [vmem:[#allocation2] sm:$0xff]
    %v42 = vld [vmem:[#allocation2 + $0x8] sm:$0xff]
    %vm43 = vcmask 130048
    %v45 = vsel %vm43, %v25, 0
    %v48 = vsel %vm43, %v26, 0
    %v51 = vsel %vm43, %v27, 0
    %v54 = vsel %vm43, %v28, 0
    %v57 = vsel %vm43, %v29, 0
    %v60 = vsel %vm43, %v30, 0
    %v63 = vsel %vm43, %v31, 0
    %v66 = vsel %vm43, %v32, 0
    %v69 = vsel %vm43, %v33, 0
    %v72 = vsel %vm43, %v34, 0
    %v75 = vsel %vm43, %v35, 0
    %v78 = vsel %vm43, %v36, 0
    %v81 = vsel %vm43, %v37, 0
    %v84 = vsel %vm43, %v38, 0
    %v87 = vsel %vm43, %v39, 0
    %v90 = vsel %vm43, %v40, 0
    %92 = vmatprep.subr.mxu0 0.0
    %93 = vmatpush1.msra.mxu0 %v41
    %94 = vmatprep.subr.mxu0 0.0
    %95 = vmatpush1.msra.mxu0 %v42
    %96 = vmatprep.subr.mxu0 0.0
    %97 = vmatpush1.msra.mxu0 0.0
    %98 = vmatprep.subr.mxu0 0.0
    %99 = vmatpush1.msra.mxu0 0.0
    %100 = vmatprep.subr.mxu0 0.0
    %101 = vmatpush1.msra.mxu0 0.0
    %102 = vmatprep.subr.mxu0 0.0
    %103 = vmatpush1.msra.mxu0 0.0
    %104 = vmatprep.subr.mxu0 0.0
    %105 = vmatpush1.msra.mxu0 0.0
    %106 = vmatprep.subr.mxu0 0.0
    %107 = vmatpush1.msra.mxu0 0.0
    %108 = vmatprep.subr.mxu0 0.0
    %109 = vmatpush1.msra.mxu0 0.0
    %110 = vmatprep.subr.mxu0 0.0
    %111 = vmatpush1.msra.mxu0 0.0
    %112 = vmatprep.subr.mxu0 0.0
    %113 = vmatpush1.msra.mxu0 0.0
    %114 = vmatprep.subr.mxu0 0.0
    %115 = vmatpush1.msra.mxu0 0.0
    %116 = vmatprep.subr.mxu0 0.0
    %117 = vmatpush1.msra.mxu0 0.0
    %118 = vmatprep.subr.mxu0 0.0
    %119 = vmatpush1.msra.mxu0 0.0
    %120 = vmatprep.subr.mxu0 0.0
    %121 = vmatpush1.msra.mxu0 0.0
    %122 = vmatprep.subr.mxu0 0.0
    %123 = vmatpush1.msra.mxu0 0.0
    %124 = vmatprep.subr.mxu0 0.0
    %125 = vmatpush1.msra.mxu0 0.0
    %126 = vmatprep.subr.mxu0 0.0
    %127 = vmatpush1.msra.mxu0 0.0
    %128 = vmatprep.subr.mxu0 0.0
    %129 = vmatpush1.msra.mxu0 0.0
    %130 = vmatprep.subr.mxu0 0.0
    %131 = vmatpush1.msra.mxu0 0.0
    %132 = vmatprep.subr.mxu0 0.0
    %133 = vmatpush1.msra.mxu0 0.0
    %134 = vmatprep.subr.mxu0 0.0
    %135 = vmatpush1.msra.mxu0 0.0
    %136 = vmatprep.subr.mxu0 0.0
    %137 = vmatpush1.msra.mxu0 0.0
    %138 = vmatprep.subr.mxu0 0.0
    %139 = vmatpush1.msra.mxu0 0.0
    %140 = vmatprep.subr.mxu0 0.0
    %141 = vmatpush1.msra.mxu0 0.0
    %142 = vmatprep.subr.mxu0 0.0
    %143 = vmatpush1.msra.mxu0 0.0
    %144 = vmatprep.subr.mxu0 0.0
    %145 = vmatpush1.msra.mxu0 0.0
    %146 = vmatprep.subr.mxu0 0.0
    %147 = vmatpush1.msra.mxu0 0.0
    %148 = vmatprep.subr.mxu0 0.0
    %149 = vmatpush1.msra.mxu0 0.0
    %150 = vmatprep.subr.mxu0 0.0
    %151 = vmatpush1.msra.mxu0 0.0
    %152 = vmatprep.subr.mxu0 0.0
    %153 = vmatpush1.msra.mxu0 0.0
    %154 = vmatprep.subr.mxu0 0.0
    %155 = vmatpush1.msra.mxu0 0.0
    %156 = vmatprep.mubr.f32.mxu0 0.0
    %157 = vmatmul.mubr.f32.gmra.mrb[0].mxu0 %v45
    %v158 = vpop.f32.mrb[0].mxu0
    %v159 = vadd.f32 0.0, %v158
    %v160 = vpop.f32.mrb[0].mxu0
    %161 = vmatprep.mubr.f32.mxu0 0.0
    %162 = vmatmul.mubr.f32.gmra.mrb[0].mxu0 %v48
    %v163 = vpop.f32.mrb[0].mxu0
    %v164 = vadd.f32 0.0, %v163
    %v165 = vpop.f32.mrb[0].mxu0
    %166 = vmatprep.mubr.f32.mxu0 0.0
    %167 = vmatmul.mubr.f32.gmra.mrb[0].mxu0 %v51
    %v168 = vpop.f32.mrb[0].mxu0
    %v169 = vadd.f32 0.0, %v168
    %v170 = vpop.f32.mrb[0].mxu0
    %171 = vmatprep.mubr.f32.mxu0 0.0
    %172 = vmatmul.mubr.f32.gmra.mrb[0].mxu0 %v54
    %v173 = vpop.f32.mrb[0].mxu0
    %v174 = vadd.f32 0.0, %v173
    %v175 = vpop.f32.mrb[0].mxu0
    %176 = vmatprep.mubr.f32.mxu0 0.0
    %177 = vmatmul.mubr.f32.gmra.mrb[0].mxu0 %v57
    %v178 = vpop.f32.mrb[0].mxu0
    %v179 = vadd.f32 0.0, %v178
    %v180 = vpop.f32.mrb[0].mxu0
    %181 = vmatprep.mubr.f32.mxu0 0.0
    %182 = vmatmul.mubr.f32.gmra.mrb[0].mxu0 %v60
    %v183 = vpop.f32.mrb[0].mxu0
    %v184 = vadd.f32 0.0, %v183
    %v185 = vpop.f32.mrb[0].mxu0
    %186 = vmatprep.mubr.f32.mxu0 0.0
    %187 = vmatmul.mubr.f32.gmra.mrb[0].mxu0 %v63
    %v188 = vpop.f32.mrb[0].mxu0
    %v189 = vadd.f32 0.0, %v188
    %v190 = vpop.f32.mrb[0].mxu0
    %191 = vmatprep.mubr.f32.mxu0 0.0
    %192 = vmatmul.mubr.f32.gmra.mrb[0].mxu0 %v66
    %v193 = vpop.f32.mrb[0].mxu0
    %v194 = vadd.f32 0.0, %v193
    %v195 = vpop.f32.mrb[0].mxu0
    %196 = vmatprep.mubr.f32.mxu0 0.0
    %197 = vmatmul.mubr.f32.gmra.mrb[0].mxu0 %v69
    %v198 = vpop.f32.mrb[0].mxu0
    %v199 = vadd.f32 0.0, %v198
    %v200 = vpop.f32.mrb[0].mxu0
    %201 = vmatprep.mubr.f32.mxu0 0.0
    %202 = vmatmul.mubr.f32.gmra.mrb[0].mxu0 %v72
    %v203 = vpop.f32.mrb[0].mxu0
    %v204 = vadd.f32 0.0, %v203
    %v205 = vpop.f32.mrb[0].mxu0
    %206 = vmatprep.mubr.f32.mxu0 0.0
    %207 = vmatmul.mubr.f32.gmra.mrb[0].mxu0 %v75
    %v208 = vpop.f32.mrb[0].mxu0
    %v209 = vadd.f32 0.0, %v208
    %v210 = vpop.f32.mrb[0].mxu0
    %211 = vmatprep.mubr.f32.mxu0 0.0
    %212 = vmatmul.mubr.f32.gmra.mrb[0].mxu0 %v78
    %v213 = vpop.f32.mrb[0].mxu0
    %v214 = vadd.f32 0.0, %v213
    %v215 = vpop.f32.mrb[0].mxu0
    %216 = vmatprep.mubr.f32.mxu0 0.0
    %217 = vmatmul.mubr.f32.gmra.mrb[0].mxu0 %v81
    %v218 = vpop.f32.mrb[0].mxu0
    %v219 = vadd.f32 0.0, %v218
    %v220 = vpop.f32.mrb[0].mxu0
    %221 = vmatprep.mubr.f32.mxu0 0.0
    %222 = vmatmul.mubr.f32.gmra.mrb[0].mxu0 %v84
    %v223 = vpop.f32.mrb[0].mxu0
    %v224 = vadd.f32 0.0, %v223
    %v225 = vpop.f32.mrb[0].mxu0
    %226 = vmatprep.mubr.f32.mxu0 0.0
    %227 = vmatmul.mubr.f32.gmra.mrb[0].mxu0 %v87
    %v228 = vpop.f32.mrb[0].mxu0
    %v229 = vadd.f32 0.0, %v228
    %v230 = vpop.f32.mrb[0].mxu0
    %231 = vmatprep.mubr.f32.mxu0 0.0
    %232 = vmatmul.mubr.f32.gmra.mrb[0].mxu0 %v90
    %v233 = vpop.f32.mrb[0].mxu0
    %v234 = vadd.f32 0.0, %v233
    %v235 = vpop.f32.mrb[0].mxu0
    %236 = vdwg.mxu0
    %v237 = vmul.f32 %v159, %v159
    %v238 = vmul.f32 %v164, %v164
    %v239 = vmul.f32 %v169, %v169
    %v240 = vmul.f32 %v174, %v174
    %v241 = vmul.f32 %v179, %v179
    %v242 = vmul.f32 %v184, %v184
    %v243 = vmul.f32 %v189, %v189
    %v244 = vmul.f32 %v194, %v194
    %v245 = vmul.f32 %v199, %v199
    %v246 = vmul.f32 %v204, %v204
    %v247 = vmul.f32 %v209, %v209
    %v248 = vmul.f32 %v214, %v214
    %v249 = vmul.f32 %v219, %v219
    %v250 = vmul.f32 %v224, %v224
    %v251 = vmul.f32 %v229, %v229
    %v252 = vmul.f32 %v234, %v234
    %v253 = vadd.f32 %v159, %v164
    %v254 = vadd.f32 %v253, %v169
    %v255 = vadd.f32 %v254, %v174
    %v256 = vadd.f32 %v255, %v179
    %v257 = vadd.f32 %v256, %v184
    %v258 = vadd.f32 %v257, %v189
    %v259 = vadd.f32 %v258, %v194
    %v260 = vadd.f32 %v259, %v199
    %v261 = vadd.f32 %v260, %v204
    %v262 = vadd.f32 %v261, %v209
    %v263 = vadd.f32 %v262, %v214
    %v264 = vadd.f32 %v263, %v219
    %v265 = vadd.f32 %v264, %v224
    %v266 = vadd.f32 %v265, %v229
    %v267 = vadd.f32 %v266, %v234
    %v268 = vrot.slane %v267, 4
    %v269 = vadd.f32 %v267, %v268
    %v270 = vrot.slane %v269, 2
    %v271 = vadd.f32 %v269, %v270
    %v272 = vrot.slane %v271, 1
    %v273 = vadd.f32 %v271, %v272
    %v274 = vadd.f32 %v237, %v238
    %v275 = vadd.f32 %v274, %v239
    %v276 = vadd.f32 %v275, %v240
    %v277 = vadd.f32 %v276, %v241
    %v278 = vadd.f32 %v277, %v242
    %v279 = vadd.f32 %v278, %v243
    %v280 = vadd.f32 %v279, %v244
    %v281 = vadd.f32 %v280, %v245
    %v282 = vadd.f32 %v281, %v246
    %v283 = vadd.f32 %v282, %v247
    %v284 = vadd.f32 %v283, %v248
    %v285 = vadd.f32 %v284, %v249
    %v286 = vadd.f32 %v285, %v250
    %v287 = vadd.f32 %v286, %v251
    %v288 = vadd.f32 %v287, %v252
    %v289 = vrot.slane %v288, 4
    %v290 = vadd.f32 %v288, %v289
    %v291 = vrot.slane %v290, 2
    %v292 = vadd.f32 %v290, %v291
    %v293 = vrot.slane %v292, 1
    %v294 = vadd.f32 %v292, %v293
    %v295 = vmul.f32 %v273, 0.0078125
    %v296 = vmul.f32 %v294, 0.0078125
    %v297 = vmul.f32 %v295, %v295
    %v298 = vsub.f32 %v296, %v297
    %v299 = vld [vmem:[#allocation2 + $0x10] sm:$0xff]
    %v300 = vadd.f32 %v298, 1e-05
    %v301 = vrsqrt.pop %v300
    %v302 = vmul.f32 %v299, %v301
    %v303 = vmul.f32 %v295, %v302
    %v305 = vrot.slane %v303, 7
    %v307 = vsub.f32 %v299, %v305
    %v308 = vlaneseq
    %v309 = vshrl.u32 %v308, 7
    %v310 = vsub.s32 0, %v309
    %v311 = vrot.slane %v302, %v310
    %v312 = vmul.f32 %v159, %v311
    %v313 = vmul.f32 %v164, %v311
    %v314 = vmul.f32 %v169, %v311
    %v315 = vmul.f32 %v174, %v311
    %v316 = vmul.f32 %v179, %v311
    %v317 = vmul.f32 %v184, %v311
    %v318 = vmul.f32 %v189, %v311
    %v319 = vmul.f32 %v194, %v311
    %v320 = vmul.f32 %v199, %v311
    %v321 = vmul.f32 %v204, %v311
    %v322 = vmul.f32 %v209, %v311
    %v323 = vmul.f32 %v214, %v311
    %v324 = vmul.f32 %v219, %v311
    %v325 = vmul.f32 %v224, %v311
    %v326 = vmul.f32 %v229, %v311
    %v327 = vmul.f32 %v234, %v311
    %v328 = vlaneseq
    %v329 = vshrl.u32 %v328, 7
    %v330 = vsub.s32 1, %v329
    %v331 = vrot.slane %v307, %v330
    %v332 = vadd.f32 %v312, %v331
    %v333 = vadd.f32 %v313, %v331
    %v334 = vadd.f32 %v314, %v331
    %v335 = vadd.f32 %v315, %v331
    %v336 = vadd.f32 %v316, %v331
    %v337 = vadd.f32 %v317, %v331
    %v338 = vadd.f32 %v318, %v331
    %v339 = vadd.f32 %v319, %v331
    %v340 = vadd.f32 %v320, %v331
    %v341 = vadd.f32 %v321, %v331
    %v342 = vadd.f32 %v322, %v331
    %v343 = vadd.f32 %v323, %v331
    %v344 = vadd.f32 %v324, %v331
    %v345 = vadd.f32 %v325, %v331
    %v346 = vadd.f32 %v326, %v331
    %v347 = vadd.f32 %v327, %v331
    %v348 = vmax.f32 %v332, 0.0
    %v349 = vmax.f32 %v333, 0.0
    %v350 = vmax.f32 %v334, 0.0
    %v351 = vmax.f32 %v335, 0.0
    %v352 = vmax.f32 %v336, 0.0
    %v353 = vmax.f32 %v337, 0.0
    %v354 = vmax.f32 %v338, 0.0
    %v355 = vmax.f32 %v339, 0.0
    %v356 = vmax.f32 %v340, 0.0
    %v357 = vmax.f32 %v341, 0.0
    %v358 = vmax.f32 %v342, 0.0
    %v359 = vmax.f32 %v343, 0.0
    %v360 = vmax.f32 %v344, 0.0
    %v361 = vmax.f32 %v345, 0.0
    %v362 = vmax.f32 %v346, 0.0
    %v363 = vmax.f32 %v347, 0.0
    %v364 = vld [vmem:[#allocation2 + $0x18] sm:$0xff]
    %v365 = vld [vmem:[#allocation2 + $0x20] sm:$0xff]
    %v366 = vld [vmem:[#allocation2 + $0x28] sm:$0xff]
    %v367 = vld [vmem:[#allocation2 + $0x30] sm:$0xff]
    %v368 = vld [vmem:[#allocation2 + $0x38] sm:$0xff]
    %v369 = vld [vmem:[#allocation2 + $0x40] sm:$0xff]
    %v370 = vld [vmem:[#allocation2 + $0x48] sm:$0xff]
    %v371 = vld [vmem:[#allocation2 + $0x50] sm:$0xff]
    %v372 = vld [vmem:[#allocation2 + $0x58] sm:$0xff]
    %v373 = vld [vmem:[#allocation2 + $0x60] sm:$0xff]
    %v374 = vld [vmem:[#allocation2 + $0x68] sm:$0xff]
    %v375 = vld [vmem:[#allocation2 + $0x70] sm:$0xff]
    %v376 = vld [vmem:[#allocation2 + $0x78] sm:$0xff]
    %v377 = vld [vmem:[#allocation2 + $0x80] sm:$0xff]
    %v378 = vld [vmem:[#allocation2 + $0x88] sm:$0xff]
    %v379 = vld [vmem:[#allocation2 + $0x90] sm:$0xff]
    %380 = vmatprep.subr.mxu0 0.0
    %381 = vmatpush1.msra.mxu0 %v364
    %382 = vmatprep.subr.mxu0 0.0
    %383 = vmatpush1.msra.mxu0 %v365
    %384 = vmatprep.subr.mxu0 0.0
    %385 = vmatpush1.msra.mxu0 %v366
    %386 = vmatprep.subr.mxu0 0.0
    %387 = vmatpush1.msra.mxu0 %v367
    %388 = vmatprep.subr.mxu0 0.0
    %389 = vmatpush1.msra.mxu0 %v368
    %390 = vmatprep.subr.mxu0 0.0
    %391 = vmatpush1.msra.mxu0 %v369
    %392 = vmatprep.subr.mxu0 0.0
    %393 = vmatpush1.msra.mxu0 %v370
    %394 = vmatprep.subr.mxu0 0.0
    %395 = vmatpush1.msra.mxu0 %v371
    %396 = vmatprep.subr.mxu0 0.0
    %397 = vmatpush1.msra.mxu0 %v372
    %398 = vmatprep.subr.mxu0 0.0
    %399 = vmatpush1.msra.mxu0 %v373
    %400 = vmatprep.subr.mxu0 0.0
    %401 = vmatpush1.msra.mxu0 %v374
    %402 = vmatprep.subr.mxu0 0.0
    %403 = vmatpush1.msra.mxu0 %v375
    %404 = vmatprep.subr.mxu0 0.0
    %405 = vmatpush1.msra.mxu0 %v376
    %406 = vmatprep.subr.mxu0 0.0
    %407 = vmatpush1.msra.mxu0 %v377
    %408 = vmatprep.subr.mxu0 0.0
    %409 = vmatpush1.msra.mxu0 %v378
    %410 = vmatprep.subr.mxu0 0.0
    %411 = vmatpush1.msra.mxu0 %v379
    %412 = vmatprep.subr.mxu0 0.0
    %413 = vmatpush1.msra.mxu0 0.0
    %414 = vmatprep.subr.mxu0 0.0
    %415 = vmatpush1.msra.mxu0 0.0
    %416 = vmatprep.subr.mxu0 0.0
    %417 = vmatpush1.msra.mxu0 0.0
    %418 = vmatprep.subr.mxu0 0.0
    %419 = vmatpush1.msra.mxu0 0.0
    %420 = vmatprep.subr.mxu0 0.0
    %421 = vmatpush1.msra.mxu0 0.0
    %422 = vmatprep.subr.mxu0 0.0
    %423 = vmatpush1.msra.mxu0 0.0
    %424 = vmatprep.subr.mxu0 0.0
    %425 = vmatpush1.msra.mxu0 0.0
    %426 = vmatprep.subr.mxu0 0.0
    %427 = vmatpush1.msra.mxu0 0.0
    %428 = vmatprep.subr.mxu0 0.0
    %429 = vmatpush1.msra.mxu0 0.0
    %430 = vmatprep.subr.mxu0 0.0
    %431 = vmatpush1.msra.mxu0 0.0
    %432 = vmatprep.subr.mxu0 0.0
    %433 = vmatpush1.msra.mxu0 0.0
    %434 = vmatprep.subr.mxu0 0.0
    %435 = vmatpush1.msra.mxu0 0.0
    %436 = vmatprep.subr.mxu0 0.0
    %437 = vmatpush1.msra.mxu0 0.0
    %438 = vmatprep.subr.mxu0 0.0
    %439 = vmatpush1.msra.mxu0 0.0
    %440 = vmatprep.subr.mxu0 0.0
    %441 = vmatpush1.msra.mxu0 0.0
    %442 = vmatprep.subr.mxu0 0.0
    %443 = vmatpush1.msra.mxu0 0.0
    %444 = vmatprep.mubr.f32.mxu0 0.0
    %445 = vmatmul.mubr.f32.gmra.mrb[0].mxu0 %v348
    %v446 = vpop.f32.mrb[0].mxu0
    %v447 = vadd.f32 0.0, %v446
    %v448 = vpop.f32.mrb[0].mxu0
    %449 = vmatprep.mubr.f32.mxu0 0.0
    %450 = vmatmul.mubr.f32.gmra.mrb[0].mxu0 %v349
    %v451 = vpop.f32.mrb[0].mxu0
    %v452 = vadd.f32 0.0, %v451
    %v453 = vpop.f32.mrb[0].mxu0
    %454 = vmatprep.mubr.f32.mxu0 0.0
    %455 = vmatmul.mubr.f32.gmra.mrb[0].mxu0 %v350
    %v456 = vpop.f32.mrb[0].mxu0
    %v457 = vadd.f32 0.0, %v456
    %v458 = vpop.f32.mrb[0].mxu0
    %459 = vmatprep.mubr.f32.mxu0 0.0
    %460 = vmatmul.mubr.f32.gmra.mrb[0].mxu0 %v351
    %v461 = vpop.f32.mrb[0].mxu0
    %v462 = vadd.f32 0.0, %v461
    %v463 = vpop.f32.mrb[0].mxu0
    %464 = vmatprep.mubr.f32.mxu0 0.0
    %465 = vmatmul.mubr.f32.gmra.mrb[0].mxu0 %v352
    %v466 = vpop.f32.mrb[0].mxu0
    %v467 = vadd.f32 0.0, %v466
    %v468 = vpop.f32.mrb[0].mxu0
    %469 = vmatprep.mubr.f32.mxu0 0.0
    %470 = vmatmul.mubr.f32.gmra.mrb[0].mxu0 %v353
    %v471 = vpop.f32.mrb[0].mxu0
    %v472 = vadd.f32 0.0, %v471
    %v473 = vpop.f32.mrb[0].mxu0
    %474 = vmatprep.mubr.f32.mxu0 0.0
    %475 = vmatmul.mubr.f32.gmra.mrb[0].mxu0 %v354
    %v476 = vpop.f32.mrb[0].mxu0
    %v477 = vadd.f32 0.0, %v476
    %v478 = vpop.f32.mrb[0].mxu0
    %479 = vmatprep.mubr.f32.mxu0 0.0
    %480 = vmatmul.mubr.f32.gmra.mrb[0].mxu0 %v355
    %v481 = vpop.f32.mrb[0].mxu0
    %v482 = vadd.f32 0.0, %v481
    %v483 = vpop.f32.mrb[0].mxu0
    %484 = vmatprep.mubr.f32.mxu0 0.0
    %485 = vmatmul.mubr.f32.gmra.mrb[0].mxu0 %v356
    %v486 = vpop.f32.mrb[0].mxu0
    %v487 = vadd.f32 0.0, %v486
    %v488 = vpop.f32.mrb[0].mxu0
    %489 = vmatprep.mubr.f32.mxu0 0.0
    %490 = vmatmul.mubr.f32.gmra.mrb[0].mxu0 %v357
    %v491 = vpop.f32.mrb[0].mxu0
    %v492 = vadd.f32 0.0, %v491
    %v493 = vpop.f32.mrb[0].mxu0
    %494 = vmatprep.mubr.f32.mxu0 0.0
    %495 = vmatmul.mubr.f32.gmra.mrb[0].mxu0 %v358
    %v496 = vpop.f32.mrb[0].mxu0
    %v497 = vadd.f32 0.0, %v496
    %v498 = vpop.f32.mrb[0].mxu0
    %499 = vmatprep.mubr.f32.mxu0 0.0
    %500 = vmatmul.mubr.f32.gmra.mrb[0].mxu0 %v359
    %v501 = vpop.f32.mrb[0].mxu0
    %v502 = vadd.f32 0.0, %v501
    %v503 = vpop.f32.mrb[0].mxu0
    %504 = vmatprep.mubr.f32.mxu0 0.0
    %505 = vmatmul.mubr.f32.gmra.mrb[0].mxu0 %v360
    %v506 = vpop.f32.mrb[0].mxu0
    %v507 = vadd.f32 0.0, %v506
    %v508 = vpop.f32.mrb[0].mxu0
    %509 = vmatprep.mubr.f32.mxu0 0.0
    %510 = vmatmul.mubr.f32.gmra.mrb[0].mxu0 %v361
    %v511 = vpop.f32.mrb[0].mxu0
    %v512 = vadd.f32 0.0, %v511
    %v513 = vpop.f32.mrb[0].mxu0
    %514 = vmatprep.mubr.f32.mxu0 0.0
    %515 = vmatmul.mubr.f32.gmra.mrb[0].mxu0 %v362
    %v516 = vpop.f32.mrb[0].mxu0
    %v517 = vadd.f32 0.0, %v516
    %v518 = vpop.f32.mrb[0].mxu0
    %519 = vmatprep.mubr.f32.mxu0 0.0
    %520 = vmatmul.mubr.f32.gmra.mrb[0].mxu0 %v363
    %v521 = vpop.f32.mrb[0].mxu0
    %v522 = vadd.f32 0.0, %v521
    %v523 = vpop.f32.mrb[0].mxu0
    %524 = vdwg.mxu0
    %v525 = vmul.f32 %v447, %v447
    %v526 = vmul.f32 %v452, %v452
    %v527 = vmul.f32 %v457, %v457
    %v528 = vmul.f32 %v462, %v462
    %v529 = vmul.f32 %v467, %v467
    %v530 = vmul.f32 %v472, %v472
    %v531 = vmul.f32 %v477, %v477
    %v532 = vmul.f32 %v482, %v482
    %v533 = vmul.f32 %v487, %v487
    %v534 = vmul.f32 %v492, %v492
    %v535 = vmul.f32 %v497, %v497
    %v536 = vmul.f32 %v502, %v502
    %v537 = vmul.f32 %v507, %v507
    %v538 = vmul.f32 %v512, %v512
    %v539 = vmul.f32 %v517, %v517
    %v540 = vmul.f32 %v522, %v522
    %v541 = vadd.f32 %v447, %v452
    %v542 = vadd.f32 %v541, %v457
    %v543 = vadd.f32 %v542, %v462
    %v544 = vadd.f32 %v543, %v467
    %v545 = vadd.f32 %v544, %v472
    %v546 = vadd.f32 %v545, %v477
    %v547 = vadd.f32 %v546, %v482
    %v548 = vadd.f32 %v547, %v487
    %v549 = vadd.f32 %v548, %v492
    %v550 = vadd.f32 %v549, %v497
    %v551 = vadd.f32 %v550, %v502
    %v552 = vadd.f32 %v551, %v507
    %v553 = vadd.f32 %v552, %v512
    %v554 = vadd.f32 %v553, %v517
    %v555 = vadd.f32 %v554, %v522
    %v556 = vrot.slane %v555, 4
    %v557 = vadd.f32 %v555, %v556
    %v558 = vrot.slane %v557, 2
    %v559 = vadd.f32 %v557, %v558
    %v560 = vrot.slane %v559, 1
    %v561 = vadd.f32 %v559, %v560
    %v562 = vadd.f32 %v525, %v526
    %v563 = vadd.f32 %v562, %v527
    %v564 = vadd.f32 %v563, %v528
    %v565 = vadd.f32 %v564, %v529
    %v566 = vadd.f32 %v565, %v530
    %v567 = vadd.f32 %v566, %v531
    %v568 = vadd.f32 %v567, %v532
    %v569 = vadd.f32 %v568, %v533
    %v570 = vadd.f32 %v569, %v534
    %v571 = vadd.f32 %v570, %v535
    %v572 = vadd.f32 %v571, %v536
    %v573 = vadd.f32 %v572, %v537
    %v574 = vadd.f32 %v573, %v538
    %v575 = vadd.f32 %v574, %v539
    %v576 = vadd.f32 %v575, %v540
    %v577 = vrot.slane %v576, 4
    %v578 = vadd.f32 %v576, %v577
    %v579 = vrot.slane %v578, 2
    %v580 = vadd.f32 %v578, %v579
    %v581 = vrot.slane %v580, 1
    %v582 = vadd.f32 %v580, %v581
    %v583 = vmul.f32 %v561, 0.0078125
    %v584 = vmul.f32 %v582, 0.0078125
    %v585 = vmul.f32 %v583, %v583
    %v586 = vsub.f32 %v584, %v585
    %v587 = vld [vmem:[#allocation2 + $0x98] sm:$0xff]
    %v588 = vadd.f32 %v586, 1e-05
    %v589 = vrsqrt.pop %v588
    %v590 = vmul.f32 %v587, %v589
    %v591 = vmul.f32 %v583, %v590
    %v593 = vrot.slane %v591, 7
    %v595 = vsub.f32 %v587, %v593
    %v596 = vlaneseq
    %v597 = vshrl.u32 %v596, 7
    %v598 = vsub.s32 0, %v597
    %v599 = vrot.slane %v590, %v598
    %v600 = vmul.f32 %v447, %v599
    %v601 = vmul.f32 %v452, %v599
    %v602 = vmul.f32 %v457, %v599
    %v603 = vmul.f32 %v462, %v599
    %v604 = vmul.f32 %v467, %v599
    %v605 = vmul.f32 %v472, %v599
    %v606 = vmul.f32 %v477, %v599
    %v607 = vmul.f32 %v482, %v599
    %v608 = vmul.f32 %v487, %v599
    %v609 = vmul.f32 %v492, %v599
    %v610 = vmul.f32 %v497, %v599
    %v611 = vmul.f32 %v502, %v599
    %v612 = vmul.f32 %v507, %v599
    %v613 = vmul.f32 %v512, %v599
    %v614 = vmul.f32 %v517, %v599
    %v615 = vmul.f32 %v522, %v599
    %v616 = vlaneseq
    %v617 = vshrl.u32 %v616, 7
    %v618 = vsub.s32 1, %v617
    %v619 = vrot.slane %v595, %v618
    %v620 = vadd.f32 %v600, %v619
    %v621 = vadd.f32 %v601, %v619
    %v622 = vadd.f32 %v602, %v619
    %v623 = vadd.f32 %v603, %v619
    %v624 = vadd.f32 %v604, %v619
    %v625 = vadd.f32 %v605, %v619
    %v626 = vadd.f32 %v606, %v619
    %v627 = vadd.f32 %v607, %v619
    %v628 = vadd.f32 %v608, %v619
    %v629 = vadd.f32 %v609, %v619
    %v630 = vadd.f32 %v610, %v619
    %v631 = vadd.f32 %v611, %v619
    %v632 = vadd.f32 %v612, %v619
    %v633 = vadd.f32 %v613, %v619
    %v634 = vadd.f32 %v614, %v619
    %v635 = vadd.f32 %v615, %v619
    %v636 = vmax.f32 %v620, 0.0
    %v637 = vmax.f32 %v621, 0.0
    %v638 = vmax.f32 %v622, 0.0
    %v639 = vmax.f32 %v623, 0.0
    %v640 = vmax.f32 %v624, 0.0
    %v641 = vmax.f32 %v625, 0.0
    %v642 = vmax.f32 %v626, 0.0
    %v643 = vmax.f32 %v627, 0.0
    %v644 = vmax.f32 %v628, 0.0
    %v645 = vmax.f32 %v629, 0.0
    %v646 = vmax.f32 %v630, 0.0
    %v647 = vmax.f32 %v631, 0.0
    %v648 = vmax.f32 %v632, 0.0
    %v649 = vmax.f32 %v633, 0.0
    %v650 = vmax.f32 %v634, 0.0
    %v651 = vmax.f32 %v635, 0.0
    %v652 = vld [vmem:[#allocation2 + $0xa0] sm:$0xff]
    %v653 = vld [vmem:[#allocation2 + $0xa8] sm:$0xff]
    %v654 = vld [vmem:[#allocation2 + $0xb0] sm:$0xff]
    %v655 = vld [vmem:[#allocation2 + $0xb8] sm:$0xff]
    %v656 = vld [vmem:[#allocation2 + $0xc0] sm:$0xff]
    %v657 = vld [vmem:[#allocation2 + $0xc8] sm:$0xff]
    %v658 = vld [vmem:[#allocation2 + $0xd0] sm:$0xff]
    %v659 = vld [vmem:[#allocation2 + $0xd8] sm:$0xff]
    %v660 = vld [vmem:[#allocation2 + $0xe0] sm:$0xff]
    %v661 = vld [vmem:[#allocation2 + $0xe8] sm:$0xff]
    %v662 = vld [vmem:[#allocation2 + $0xf0] sm:$0xff]
    %v663 = vld [vmem:[#allocation2 + $0xf8] sm:$0xff]
    %v664 = vld [vmem:[#allocation2 + $0x100] sm:$0xff]
    %v665 = vld [vmem:[#allocation2 + $0x108] sm:$0xff]
    %v666 = vld [vmem:[#allocation2 + $0x110] sm:$0xff]
    %v667 = vld [vmem:[#allocation2 + $0x118] sm:$0xff]
    %v668 = vld [vmem:[#allocation2 + $0x120] sm:$0xff]
    %v669 = vlaneseq
    %v670 = vshrl.u32 %v669, 7
    %v671 = vsub.s32 0, %v670
    %v672 = vrot.slane %v668, %v671
    %673 = vmatprep.subr.mxu0 0.0
    %674 = vmatpush1.msra.mxu0 %v652
    %675 = vmatprep.subr.mxu0 0.0
    %676 = vmatpush1.msra.mxu0 %v653
    %677 = vmatprep.subr.mxu0 0.0
    %678 = vmatpush1.msra.mxu0 %v654
    %679 = vmatprep.subr.mxu0 0.0
    %680 = vmatpush1.msra.mxu0 %v655
    %681 = vmatprep.subr.mxu0 0.0
    %682 = vmatpush1.msra.mxu0 %v656
    %683 = vmatprep.subr.mxu0 0.0
    %684 = vmatpush1.msra.mxu0 %v657
    %685 = vmatprep.subr.mxu0 0.0
    %686 = vmatpush1.msra.mxu0 %v658
    %687 = vmatprep.subr.mxu0 0.0
    %688 = vmatpush1.msra.mxu0 %v659
    %689 = vmatprep.subr.mxu0 0.0
    %690 = vmatpush1.msra.mxu0 %v660
    %691 = vmatprep.subr.mxu0 0.0
    %692 = vmatpush1.msra.mxu0 %v661
    %693 = vmatprep.subr.mxu0 0.0
    %694 = vmatpush1.msra.mxu0 %v662
    %695 = vmatprep.subr.mxu0 0.0
    %696 = vmatpush1.msra.mxu0 %v663
    %697 = vmatprep.subr.mxu0 0.0
    %698 = vmatpush1.msra.mxu0 %v664
    %699 = vmatprep.subr.mxu0 0.0
    %700 = vmatpush1.msra.mxu0 %v665
    %701 = vmatprep.subr.mxu0 0.0
    %702 = vmatpush1.msra.mxu0 %v666
    %703 = vmatprep.subr.mxu0 0.0
    %704 = vmatpush1.msra.mxu0 %v667
    %705 = vmatprep.subr.mxu0 0.0
    %706 = vmatpush1.msra.mxu0 0.0
    %707 = vmatprep.subr.mxu0 0.0
    %708 = vmatpush1.msra.mxu0 0.0
    %709 = vmatprep.subr.mxu0 0.0
    %710 = vmatpush1.msra.mxu0 0.0
    %711 = vmatprep.subr.mxu0 0.0
    %712 = vmatpush1.msra.mxu0 0.0
    %713 = vmatprep.subr.mxu0 0.0
    %714 = vmatpush1.msra.mxu0 0.0
    %715 = vmatprep.subr.mxu0 0.0
    %716 = vmatpush1.msra.mxu0 0.0
    %717 = vmatprep.subr.mxu0 0.0
    %718 = vmatpush1.msra.mxu0 0.0
    %719 = vmatprep.subr.mxu0 0.0
    %720 = vmatpush1.msra.mxu0 0.0
    %721 = vmatprep.subr.mxu0 0.0
    %722 = vmatpush1.msra.mxu0 0.0
    %723 = vmatprep.subr.mxu0 0.0
    %724 = vmatpush1.msra.mxu0 0.0
    %725 = vmatprep.subr.mxu0 0.0
    %726 = vmatpush1.msra.mxu0 0.0
    %727 = vmatprep.subr.mxu0 0.0
    %728 = vmatpush1.msra.mxu0 0.0
    %729 = vmatprep.subr.mxu0 0.0
    %730 = vmatpush1.msra.mxu0 0.0
    %731 = vmatprep.subr.mxu0 0.0
    %732 = vmatpush1.msra.mxu0 0.0
    %733 = vmatprep.subr.mxu0 0.0
    %734 = vmatpush1.msra.mxu0 0.0
    %735 = vmatprep.subr.mxu0 0.0
    %736 = vmatpush1.msra.mxu0 0.0
    %737 = vmatprep.mubr.f32.mxu0 0.0
    %738 = vmatmul.mubr.f32.gmra.mrb[0].mxu0 %v636
    %v739 = vpop.f32.mrb[0].mxu0
    %v740 = vadd.f32 %v672, %v739
    %v741 = vpop.f32.mrb[0].mxu0
    %742 = vmatprep.mubr.f32.mxu0 0.0
    %743 = vmatmul.mubr.f32.gmra.mrb[0].mxu0 %v637
    %v744 = vpop.f32.mrb[0].mxu0
    %v745 = vadd.f32 %v672, %v744
    %v746 = vpop.f32.mrb[0].mxu0
    %747 = vmatprep.mubr.f32.mxu0 0.0
    %748 = vmatmul.mubr.f32.gmra.mrb[0].mxu0 %v638
    %v749 = vpop.f32.mrb[0].mxu0
    %v750 = vadd.f32 %v672, %v749
    %v751 = vpop.f32.mrb[0].mxu0
    %752 = vmatprep.mubr.f32.mxu0 0.0
    %753 = vmatmul.mubr.f32.gmra.mrb[0].mxu0 %v639
    %v754 = vpop.f32.mrb[0].mxu0
    %v755 = vadd.f32 %v672, %v754
    %v756 = vpop.f32.mrb[0].mxu0
    %757 = vmatprep.mubr.f32.mxu0 0.0
    %758 = vmatmul.mubr.f32.gmra.mrb[0].mxu0 %v640
    %v759 = vpop.f32.mrb[0].mxu0
    %v760 = vadd.f32 %v672, %v759
    %v761 = vpop.f32.mrb[0].mxu0
    %762 = vmatprep.mubr.f32.mxu0 0.0
    %763 = vmatmul.mubr.f32.gmra.mrb[0].mxu0 %v641
    %v764 = vpop.f32.mrb[0].mxu0
    %v765 = vadd.f32 %v672, %v764
    %v766 = vpop.f32.mrb[0].mxu0
    %767 = vmatprep.mubr.f32.mxu0 0.0
    %768 = vmatmul.mubr.f32.gmra.mrb[0].mxu0 %v642
    %v769 = vpop.f32.mrb[0].mxu0
    %v770 = vadd.f32 %v672, %v769
    %v771 = vpop.f32.mrb[0].mxu0
    %772 = vmatprep.mubr.f32.mxu0 0.0
    %773 = vmatmul.mubr.f32.gmra.mrb[0].mxu0 %v643
    %v774 = vpop.f32.mrb[0].mxu0
    %v775 = vadd.f32 %v672, %v774
    %v776 = vpop.f32.mrb[0].mxu0
    %777 = vmatprep.mubr.f32.mxu0 0.0
    %778 = vmatmul.mubr.f32.gmra.mrb[0].mxu0 %v644
    %v779 = vpop.f32.mrb[0].mxu0
    %v780 = vadd.f32 %v672, %v779
    %v781 = vpop.f32.mrb[0].mxu0
    %782 = vmatprep.mubr.f32.mxu0 0.0
    %783 = vmatmul.mubr.f32.gmra.mrb[0].mxu0 %v645
    %v784 = vpop.f32.mrb[0].mxu0
    %v785 = vadd.f32 %v672, %v784
    %v786 = vpop.f32.mrb[0].mxu0
    %787 = vmatprep.mubr.f32.mxu0 0.0
    %788 = vmatmul.mubr.f32.gmra.mrb[0].mxu0 %v646
    %v789 = vpop.f32.mrb[0].mxu0
    %v790 = vadd.f32 %v672, %v789
    %v791 = vpop.f32.mrb[0].mxu0
    %792 = vmatprep.mubr.f32.mxu0 0.0
    %793 = vmatmul.mubr.f32.gmra.mrb[0].mxu0 %v647
    %v794 = vpop.f32.mrb[0].mxu0
    %v795 = vadd.f32 %v672, %v794
    %v796 = vpop.f32.mrb[0].mxu0
    %797 = vmatprep.mubr.f32.mxu0 0.0
    %798 = vmatmul.mubr.f32.gmra.mrb[0].mxu0 %v648
    %v799 = vpop.f32.mrb[0].mxu0
    %v800 = vadd.f32 %v672, %v799
    %v801 = vpop.f32.mrb[0].mxu0
    %802 = vmatprep.mubr.f32.mxu0 0.0
    %803 = vmatmul.mubr.f32.gmra.mrb[0].mxu0 %v649
    %v804 = vpop.f32.mrb[0].mxu0
    %v805 = vadd.f32 %v672, %v804
    %v806 = vpop.f32.mrb[0].mxu0
    %807 = vmatprep.mubr.f32.mxu0 0.0
    %808 = vmatmul.mubr.f32.gmra.mrb[0].mxu0 %v650
    %v809 = vpop.f32.mrb[0].mxu0
    %v810 = vadd.f32 %v672, %v809
    %v811 = vpop.f32.mrb[0].mxu0
    %812 = vmatprep.mubr.f32.mxu0 0.0
    %813 = vmatmul.mubr.f32.gmra.mrb[0].mxu0 %v651
    %v814 = vpop.f32.mrb[0].mxu0
    %v815 = vadd.f32 %v672, %v814
    %v816 = vpop.f32.mrb[0].mxu0
    %817 = vdwg.mxu0
    %818 = vst [vmem:[%s2] sm:$0xff] %v740
    %819 = vst [vmem:[%s2 + $0x8] sm:$0xff] %v745
    %820 = vst [vmem:[%s2 + $0x10] sm:$0xff] %v750
    %821 = vst [vmem:[%s2 + $0x18] sm:$0xff] %v755
    %822 = vst [vmem:[%s2 + $0x20] sm:$0xff] %v760
    %823 = vst [vmem:[%s2 + $0x28] sm:$0xff] %v765
    %824 = vst [vmem:[%s2 + $0x30] sm:$0xff] %v770
    %825 = vst [vmem:[%s2 + $0x38] sm:$0xff] %v775
    %826 = vst [vmem:[%s2 + $0x40] sm:$0xff] %v780
    %827 = vst [vmem:[%s2 + $0x48] sm:$0xff] %v785
    %828 = vst [vmem:[%s2 + $0x50] sm:$0xff] %v790
    %829 = vst [vmem:[%s2 + $0x58] sm:$0xff] %v795
    %830 = vst [vmem:[%s2 + $0x60] sm:$0xff] %v800
    %831 = vst [vmem:[%s2 + $0x68] sm:$0xff] %v805
    %832 = vst [vmem:[%s2 + $0x70] sm:$0xff] %v810
    %833 = vst [vmem:[%s2 + $0x78] sm:$0xff] %v815
    // Predicated region
    $region14: #{forward.1} parent=1 // pred_check
      _
    $region15: #{forward.1} parent=1 // pred_check_branch
      %835 = sbr.rel (0) target = $region17
    $region16: #{forward.1} parent=1 // pred_region
      _
    $region17: #{forward.1} parent=1 // pred_fallthru
      _
    // Predicated region
    $region18: #{forward.1} parent=1 // pred_check
      _
    $region19: #{forward.1} parent=1 // pred_check_branch
      %837 = sbr.rel (0) target = $region21
    $region20: #{forward.1} parent=1 // pred_region
      _
    $region21: #{forward.1} parent=1 // pred_fallthru
      _
    %838 = vsyncpa [#allocation3], 1

</llo_original>
